<compile_context>
chip_gen: v7x
topology: tpu7x:2x2x1
jax: 0.10.0
libtpu: 0.0.40
codegen_flags: <defaults>
</compile_context>

<pallas_src>
import functools

import jax
import jax.numpy as jnp
from jax.experimental import pallas as pl
from jax.experimental.pallas import tpu as pltpu


# ----------------------------------------------------------------------------
# In-kernel helpers
# ----------------------------------------------------------------------------
def _householder_apply(A, z):
    """Return A + householder(A, z) = (I - v v^T) @ A with v = householder_v(z).

    z is an (n, 1) column (f32). Matches the PyTorch semantics:
      - z entirely non-negative -> v = 0 (identity).
      - else v = (|z| - z) / sqrt(|2 * dot(z, |z| - z)|)
        (dot(z, |z|-z) <= 0 always, so this is the branch PyTorch takes).
    Entirely VPU/XLU work: no MXU ops on the serial chain.
    """
    u = jnp.abs(z) - z                               # (n, 1)
    d = jnp.sum(z * u)                               # dot(z, u) <= 0
    denom_sq = jnp.abs(2.0 * d)
    safe = jnp.maximum(denom_sq, 1e-30)
    v = jnp.where(denom_sq > 0.0, u * jax.lax.rsqrt(safe), jnp.zeros_like(u))
    vTA = jnp.sum(v * A, axis=0, keepdims=True)      # (1, n)  sublane reduce (XLU)
    return A - v * vTA                               # rank-1 update on the VPU


def united_dmd_loss_kernel(label_ref,               # scalar-prefetch (SMEM), used by index_map
                           A_ref, commonA_ref, dmd_ref, pred_ref, targ_ref, x1_ref,
                           out_ref, *, L, loss_ratio):
    bf16 = jnp.bfloat16
    A0 = A_ref[0]                                    # (n, n) f32
    x1 = x1_ref[...]                                 # (1, n) f32 lane-dense row

    # z_0 = A_0 @ [x; 1]  -- broadcast multiply + lane reduce (no MXU)
    z = jnp.sum(A0 * x1, axis=-1, keepdims=True)     # (n, 1) f32

    # Running chain values: f32 copies for the norms, bf16 copies feeding the MXU.
    F0_f = A0                                        # F0 = A_{L-1} @ ... @ A_0
    F_f = _householder_apply(A0, z) if L > 1 else A0 # A_0 + M_0 (M_0 = 0 when L == 1)
    F0_b = F0_f.astype(bf16)
    F_b = F_f.astype(bf16)

    for i in range(1, L):                            # static unroll -> full LLO visibility
        Ai = A_ref[i]                                # (n, n) f32
        Ai_b = Ai.astype(bf16)

        a_b = jnp.maximum(z, 0.0).astype(bf16)       # ReLU (homogeneous 1 stays exactly 1)
        # pre-activation of layer i (bf16 single-pass MXU, f32 accumulate)
        z = jnp.dot(Ai_b, a_b, preferred_element_type=jnp.float32)        # (n, 1) f32

        # F0 chain -- independent of z/F, so it fills MXU slack off the critical path.
        F0_f = jnp.dot(Ai_b, F0_b, preferred_element_type=jnp.float32)    # (n, n) f32

        if i < L - 1:
            AiM_b = _householder_apply(Ai, z).astype(bf16)                # VPU/XLU only
        else:
            AiM_b = Ai_b                                                  # M_{L-1} = 0
        F_f = jnp.dot(AiM_b, F_b, preferred_element_type=jnp.float32)     # (n, n) f32

        if i < L - 1:
            F0_b = F0_f.astype(bf16)
            F_b = F_f.astype(bf16)

    # ---- losses (all f32, VPU/XLU) -------------------------------------------
    diff0 = F0_f - commonA_ref[...]
    dmdloss = jnp.sqrt(jnp.sum(diff0 * diff0))                 # ||F0 - commonA||_F

    # Fsigma(x) + F0 = F  ->  dmdloss1 = ||F - dmd_data[label]||_F
    diff1 = F_f - dmd_ref[0]
    dmdloss1 = jnp.sqrt(jnp.sum(diff1 * diff1))

    err = pred_ref[...] - targ_ref[...]
    mse = jnp.sum(err * err) / float(err.shape[0] * err.shape[1])   # nn.MSELoss (mean)

    total = (loss_ratio[0] * mse + loss_ratio[1] * dmdloss + loss_ratio[2] * dmdloss1)
    out_ref[...] = jnp.reshape(total, (1, 1))


# ----------------------------------------------------------------------------
# Wrapper: all glue (make_A, stacking, casts, x1, label) lives inside one jit,
# so there is a single dispatch and the gather of dmd_data[label] is done by
# the Pallas DMA via scalar prefetch.
# ----------------------------------------------------------------------------
def make_A(W, b):
    """A = [[W, b], [0, 1]]  -- shape (out+1, in+1)."""
    n_out, n_in = W.shape
    wb = jnp.concatenate([W, b[:, None]], axis=1)
    zeroone = jnp.concatenate(
        [jnp.zeros((1, n_in), W.dtype), jnp.ones((1, 1), W.dtype)], axis=1)
    return jnp.concatenate([wb, zeroone], axis=0)


@functools.partial(jax.jit, static_argnums=(6,))
def _united_dmd_loss_jit(params, commonA, dmd_data, predicted, target, label, loss_ratio):
    A_list = [make_A(jnp.asarray(W, jnp.float32), jnp.asarray(b, jnp.float32))
              for (W, b) in params]
    shapes = {a.shape for a in A_list}
    if len(shapes) != 1 or A_list[0].shape[0] != A_list[0].shape[1]:
        raise ValueError(
            f"UnitedDMDLoss Pallas kernel requires a square MLP (all A_i of equal (n, n) "
            f"shape); got A shapes {sorted(shapes)}")
    A = jnp.stack(A_list)                            # (L, n, n) f32
    L, n, _ = A.shape

    commonA = jnp.asarray(commonA, jnp.float32)
    dmd_data = jnp.asarray(dmd_data, jnp.float32)
    predicted = jnp.asarray(predicted, jnp.float32)
    target = jnp.asarray(target, jnp.float32)
    if commonA.shape != (n, n) or dmd_data.shape[-2:] != (n, n):
        raise ValueError("commonA / dmd_data must have trailing shape (n, n), n = feat + 1")
    if target.shape[-1] != n - 1:
        raise ValueError("DMD expansion requires model input dim == output dim")

    B, dfeat = predicted.shape
    # homogeneous model input [target[-1]; 1] as a lane-dense (1, n) row
    x1 = jnp.concatenate([target[-1], jnp.ones((1,), jnp.float32)])[None, :]
    lbl = jnp.asarray(label, jnp.int32).reshape((1,))

    kernel = functools.partial(united_dmd_loss_kernel, L=int(L), loss_ratio=loss_ratio)

    grid_spec = pltpu.PrefetchScalarGridSpec(
        num_scalar_prefetch=1,
        grid=(1,),
        in_specs=[
            pl.BlockSpec((L, n, n), lambda i, lbl_ref: (0, 0, 0)),        # A stack
            pl.BlockSpec((n, n), lambda i, lbl_ref: (0, 0)),              # commonA
            pl.BlockSpec((1, n, n), lambda i, lbl_ref: (lbl_ref[0], 0, 0)),  # dmd_data[label]
            pl.BlockSpec((B, dfeat), lambda i, lbl_ref: (0, 0)),          # predicted
            pl.BlockSpec((B, dfeat), lambda i, lbl_ref: (0, 0)),          # target
            pl.BlockSpec((1, n), lambda i, lbl_ref: (0, 0)),              # x1 row
        ],
        out_specs=pl.BlockSpec((1, 1), lambda i, lbl_ref: (0, 0)),
    )

    out = pl.pallas_call(
        kernel,
        out_shape=jax.ShapeDtypeStruct((1, 1), jnp.float32),
        grid_spec=grid_spec,
        compiler_params=pltpu.CompilerParams(dimension_semantics=("arbitrary",)),
    )(lbl, A, commonA, dmd_data, predicted, target, x1)
    return out[0, 0]


def united_dmd_loss(params, commonA, dmd_data, predicted, target, label,
                    loss_ratio=(1.0, 1.0, 1.0)):
    return _united_dmd_loss_jit(params, commonA, dmd_data, predicted, target, label,
                                tuple(float(r) for r in loss_ratio))


# ----------------------------------------------------------------------------
# Pure-JAX f32 reference (for validation; HIGHEST precision matmuls)
# ----------------------------------------------------------------------------
_HI = jax.lax.Precision.HIGHEST


def _ref_hh(A, z):
    u = jnp.abs(z) - z
    d = jnp.dot(z, u)
    den = jnp.abs(2.0 * d)
    v = jnp.where(den > 0.0, u / jnp.sqrt(jnp.maximum(den, 1e-30)), jnp.zeros_like(u))
    vTA = jnp.matmul(v[None, :], A, precision=_HI)
    return A - v[:, None] * vTA


def ref_loss(params, commonA, dmd_data, predicted, target, label, loss_ratio):
    A_list = [make_A(W, b) for (W, b) in params]
    L = len(A_list)
    F0 = A_list[0]
    for i in range(1, L):
        F0 = jnp.matmul(A_list[i], F0, precision=_HI)
    x1 = jnp.concatenate([target[-1], jnp.ones(1, target.dtype)])
    z = jnp.matmul(A_list[0], x1, precision=_HI)
    F = _ref_hh(A_list[0], z) if L > 1 else A_list[0]      # M_0 = 0 when L == 1 (PyTorch)
    for i in range(1, L):
        a = jnp.maximum(z, 0.0)
        z = jnp.matmul(A_list[i], a, precision=_HI)
        AiM = _ref_hh(A_list[i], z) if i < L - 1 else A_list[i]
        F = jnp.matmul(AiM, F, precision=_HI)
    dmdloss = jnp.sqrt(jnp.sum((F0 - commonA) ** 2))
    dmdloss1 = jnp.sqrt(jnp.sum((F - dmd_data[label]) ** 2))
    mse = jnp.mean((predicted - target) ** 2)
    return loss_ratio[0] * mse + loss_ratio[1] * dmdloss + loss_ratio[2] * dmdloss1


# ----------------------------------------------------------------------------
if __name__ == "__main__":
    key = jax.random.PRNGKey(0)
    d, h, L, B, n_labels = 32, 32, 3, 8, 4        # MLP: d -> h -> h -> d (square, d == h)
    n = d + 1

    keys = jax.random.split(key, 16)
    dims = [(h, d), (h, h), (d, h)]
    params = []
    for i, (o, ii) in enumerate(dims):
        W = 0.3 * jax.random.normal(keys[2 * i], (o, ii), jnp.float32)
        b = 0.1 * jax.random.normal(keys[2 * i + 1], (o,), jnp.float32)
        params.append((W, b))

    commonA = 0.2 * jax.random.normal(keys[8], (n, n), jnp.float32)
    dmd_data = 0.2 * jax.random.normal(keys[9], (n_labels, n, n), jnp.float32)
    predicted = jax.random.normal(keys[10], (B, d), jnp.float32)
    target = jax.random.normal(keys[11], (B, d), jnp.float32)
    label = 2
    loss_ratio = (1.0, 1.0, 1.0)

    out = united_dmd_loss(params, commonA, dmd_data, predicted, target, label, loss_ratio)
    out = jax.block_until_ready(out)

    ref = ref_loss(params, commonA, dmd_data, predicted, target, label, loss_ratio)
    ref = jax.block_until_ready(ref)

    # Kernel uses bf16 MXU operands (f32 accumulation); compare against f32 reference
    # with a tolerance that admits the single-pass bf16 rounding.
    assert jnp.isfinite(out), "kernel produced non-finite loss"
    assert jnp.allclose(out, ref, rtol=1e-2, atol=1e-2), (float(out), float(ref))
    print("KERNEL_OK")
</pallas_src>

<mosaic_0001>
module attributes {stable_mosaic.version = 11 : i64} {
  func.func @united_dmd_loss_kernel(%arg0: i32, %arg1: memref<1xi32, #tpu.memory_space<smem>>, %arg2: memref<3x33x33xf32, #tpu.memory_space<vmem>>, %arg3: memref<33x33xf32, #tpu.memory_space<vmem>>, %arg4: memref<1x33x33xf32, #tpu.memory_space<vmem>>, %arg5: memref<8x32xf32, #tpu.memory_space<vmem>>, %arg6: memref<8x32xf32, #tpu.memory_space<vmem>>, %arg7: memref<1x33xf32, #tpu.memory_space<vmem>>, %arg8: memref<1x1xf32, #tpu.memory_space<vmem>>) attributes {dimension_semantics = [#tpu.dimension_semantics<arbitrary>], iteration_bounds = array<i64: 1>, scalar_prefetch = 1 : i64, scratch_operands = 0 : i64, tpu.core_type = #tpu.core_type<tc>, window_params = [{pipeline_mode = #tpu.pipeline_mode<synchronous>, transform_indices = @transform_0, window_bounds = array<i64: 3, 33, 33>}, {pipeline_mode = #tpu.pipeline_mode<synchronous>, transform_indices = @transform_1, window_bounds = array<i64: 33, 33>}, {transform_indices = @transform_2, window_bounds = array<i64: 1, 33, 33>}, {pipeline_mode = #tpu.pipeline_mode<synchronous>, transform_indices = @transform_3, window_bounds = array<i64: 8, 32>}, {pipeline_mode = #tpu.pipeline_mode<synchronous>, transform_indices = @transform_4, window_bounds = array<i64: 8, 32>}, {pipeline_mode = #tpu.pipeline_mode<synchronous>, transform_indices = @transform_5, window_bounds = array<i64: 1, 33>}, {pipeline_mode = #tpu.pipeline_mode<synchronous>, transform_indices = @transform_6, window_bounds = array<i64: 1, 1>}]} {
    %c0 = arith.constant 0 : index
    %c0_0 = arith.constant 0 : index
    %c0_1 = arith.constant 0 : index
    %0 = vector.load %arg2[%c0, %c0_0, %c0_1] : memref<3x33x33xf32, #tpu.memory_space<vmem>>, vector<1x33x33xf32>
    %1 = vector.shape_cast %0 : vector<1x33x33xf32> to vector<33x33xf32>
    %c0_2 = arith.constant 0 : index
    %c0_3 = arith.constant 0 : index
    %2 = vector.load %arg7[%c0_2, %c0_3] : memref<1x33xf32, #tpu.memory_space<vmem>>, vector<1x33xf32>
    %3 = vector.broadcast %2 : vector<1x33xf32> to vector<33x33xf32>
    %4 = arith.mulf %1, %3 : vector<33x33xf32>
    %cst = arith.constant dense<0.000000e+00> : vector<33xf32>
    %5 = vector.multi_reduction <add>, %4, %cst [1] : vector<33x33xf32> to vector<33xf32>
    %6 = vector.shape_cast %5 : vector<33xf32> to vector<33x1xf32>
    %7 = math.absf %6 : vector<33x1xf32>
    %8 = arith.subf %7, %6 : vector<33x1xf32>
    %9 = arith.mulf %6, %8 : vector<33x1xf32>
    %10 = vector.shape_cast %9 : vector<33x1xf32> to vector<1x33x1xf32>
    %cst_4 = arith.constant dense<0.000000e+00> : vector<1xf32>
    %11 = vector.multi_reduction <add>, %10, %cst_4 [1, 2] : vector<1x33x1xf32> to vector<1xf32>
    %12 = vector.shape_cast %11 : vector<1xf32> to vector<1x1x1xf32>
    %13 = vector.extract %12[0, 0, 0] : f32 from vector<1x1x1xf32>
    %cst_5 = arith.constant 2.000000e+00 : f32
    %14 = arith.mulf %cst_5, %13 : f32
    %15 = math.absf %14 : f32
    %cst_6 = arith.constant 1.000000e-30 : f32
    %16 = arith.maximumf %15, %cst_6 : f32
    %cst_7 = arith.constant 0.000000e+00 : f32
    %17 = arith.cmpf ogt, %15, %cst_7 : f32
    %18 = math.rsqrt %16 : f32
    %19 = vector.broadcast %18 : f32 to vector<33x1xf32>
    %20 = arith.mulf %8, %19 : vector<33x1xf32>
    %cst_8 = arith.constant 0.000000e+00 : f32
    %21 = vector.broadcast %cst_8 : f32 to vector<33x1xf32>
    %22 = arith.select %17, %20, %21 : vector<33x1xf32>
    %23 = vector.broadcast %22 : vector<33x1xf32> to vector<33x33xf32>
    %24 = arith.mulf %23, %1 : vector<33x33xf32>
    %cst_9 = arith.constant dense<0.000000e+00> : vector<33xf32>
    %25 = vector.multi_reduction <add>, %24, %cst_9 [0] : vector<33x33xf32> to vector<33xf32>
    %26 = vector.shape_cast %25 : vector<33xf32> to vector<1x33xf32>
    %27 = vector.broadcast %22 : vector<33x1xf32> to vector<33x33xf32>
    %28 = vector.broadcast %26 : vector<1x33xf32> to vector<33x33xf32>
    %29 = arith.mulf %27, %28 : vector<33x33xf32>
    %30 = arith.subf %1, %29 : vector<33x33xf32>
    %31 = arith.truncf %1 : vector<33x33xf32> to vector<33x33xbf16>
    %32 = arith.truncf %30 : vector<33x33xf32> to vector<33x33xbf16>
    %c1 = arith.constant 1 : index
    %c0_10 = arith.constant 0 : index
    %c0_11 = arith.constant 0 : index
    %33 = vector.load %arg2[%c1, %c0_10, %c0_11] : memref<3x33x33xf32, #tpu.memory_space<vmem>>, vector<1x33x33xf32>
    %34 = vector.shape_cast %33 : vector<1x33x33xf32> to vector<33x33xf32>
    %35 = arith.truncf %34 : vector<33x33xf32> to vector<33x33xbf16>
    %cst_12 = arith.constant 0.000000e+00 : f32
    %36 = vector.broadcast %cst_12 : f32 to vector<33x1xf32>
    %37 = arith.maximumf %6, %36 : vector<33x1xf32>
    %38 = arith.truncf %37 : vector<33x1xf32> to vector<33x1xbf16>
    %cst_13 = arith.constant dense<0.000000e+00> : vector<33x1xf32>
    %39 = tpu.matmul %35, %38, %cst_13 {dimension_numbers = #tpu.dot_dimension_numbers<[1], [0], [0], [1], [0, 0, 1, 1], [], []>} : vector<33x33xbf16>, vector<33x1xbf16>, vector<33x1xf32> -> vector<33x1xf32>
    %cst_14 = arith.constant dense<0.000000e+00> : vector<33x33xf32>
    %40 = tpu.matmul %35, %31, %cst_14 {dimension_numbers = #tpu.dot_dimension_numbers<[1], [0], [0], [1], [0, 0, 1, 1], [], []>} : vector<33x33xbf16>, vector<33x33xbf16>, vector<33x33xf32> -> vector<33x33xf32>
    %41 = math.absf %39 : vector<33x1xf32>
    %42 = arith.subf %41, %39 : vector<33x1xf32>
    %43 = arith.mulf %39, %42 : vector<33x1xf32>
    %44 = vector.shape_cast %43 : vector<33x1xf32> to vector<1x33x1xf32>
    %cst_15 = arith.constant dense<0.000000e+00> : vector<1xf32>
    %45 = vector.multi_reduction <add>, %44, %cst_15 [1, 2] : vector<1x33x1xf32> to vector<1xf32>
    %46 = vector.shape_cast %45 : vector<1xf32> to vector<1x1x1xf32>
    %47 = vector.extract %46[0, 0, 0] : f32 from vector<1x1x1xf32>
    %cst_16 = arith.constant 2.000000e+00 : f32
    %48 = arith.mulf %cst_16, %47 : f32
    %49 = math.absf %48 : f32
    %cst_17 = arith.constant 1.000000e-30 : f32
    %50 = arith.maximumf %49, %cst_17 : f32
    %cst_18 = arith.constant 0.000000e+00 : f32
    %51 = arith.cmpf ogt, %49, %cst_18 : f32
    %52 = math.rsqrt %50 : f32
    %53 = vector.broadcast %52 : f32 to vector<33x1xf32>
    %54 = arith.mulf %42, %53 : vector<33x1xf32>
    %cst_19 = arith.constant 0.000000e+00 : f32
    %55 = vector.broadcast %cst_19 : f32 to vector<33x1xf32>
    %56 = arith.select %51, %54, %55 : vector<33x1xf32>
    %57 = vector.broadcast %56 : vector<33x1xf32> to vector<33x33xf32>
    %58 = arith.mulf %57, %34 : vector<33x33xf32>
    %cst_20 = arith.constant dense<0.000000e+00> : vector<33xf32>
    %59 = vector.multi_reduction <add>, %58, %cst_20 [0] : vector<33x33xf32> to vector<33xf32>
    %60 = vector.shape_cast %59 : vector<33xf32> to vector<1x33xf32>
    %61 = vector.broadcast %56 : vector<33x1xf32> to vector<33x33xf32>
    %62 = vector.broadcast %60 : vector<1x33xf32> to vector<33x33xf32>
    %63 = arith.mulf %61, %62 : vector<33x33xf32>
    %64 = arith.subf %34, %63 : vector<33x33xf32>
    %65 = arith.truncf %64 : vector<33x33xf32> to vector<33x33xbf16>
    %cst_21 = arith.constant dense<0.000000e+00> : vector<33x33xf32>
    %66 = tpu.matmul %65, %32, %cst_21 {dimension_numbers = #tpu.dot_dimension_numbers<[1], [0], [0], [1], [0, 0, 1, 1], [], []>} : vector<33x33xbf16>, vector<33x33xbf16>, vector<33x33xf32> -> vector<33x33xf32>
    %67 = arith.truncf %40 : vector<33x33xf32> to vector<33x33xbf16>
    %68 = arith.truncf %66 : vector<33x33xf32> to vector<33x33xbf16>
    %c2 = arith.constant 2 : index
    %c0_22 = arith.constant 0 : index
    %c0_23 = arith.constant 0 : index
    %69 = vector.load %arg2[%c2, %c0_22, %c0_23] : memref<3x33x33xf32, #tpu.memory_space<vmem>>, vector<1x33x33xf32>
    %70 = vector.shape_cast %69 : vector<1x33x33xf32> to vector<33x33xf32>
    %71 = arith.truncf %70 : vector<33x33xf32> to vector<33x33xbf16>
    %cst_24 = arith.constant dense<0.000000e+00> : vector<33x33xf32>
    %72 = tpu.matmul %71, %67, %cst_24 {dimension_numbers = #tpu.dot_dimension_numbers<[1], [0], [0], [1], [0, 0, 1, 1], [], []>} : vector<33x33xbf16>, vector<33x33xbf16>, vector<33x33xf32> -> vector<33x33xf32>
    %cst_25 = arith.constant dense<0.000000e+00> : vector<33x33xf32>
    %73 = tpu.matmul %71, %68, %cst_25 {dimension_numbers = #tpu.dot_dimension_numbers<[1], [0], [0], [1], [0, 0, 1, 1], [], []>} : vector<33x33xbf16>, vector<33x33xbf16>, vector<33x33xf32> -> vector<33x33xf32>
    %c0_26 = arith.constant 0 : index
    %c0_27 = arith.constant 0 : index
    %74 = vector.load %arg3[%c0_26, %c0_27] : memref<33x33xf32, #tpu.memory_space<vmem>>, vector<33x33xf32>
    %75 = arith.subf %72, %74 : vector<33x33xf32>
    %76 = arith.mulf %75, %75 : vector<33x33xf32>
    %77 = vector.shape_cast %76 : vector<33x33xf32> to vector<1x33x33xf32>
    %cst_28 = arith.constant dense<0.000000e+00> : vector<1xf32>
    %78 = vector.multi_reduction <add>, %77, %cst_28 [1, 2] : vector<1x33x33xf32> to vector<1xf32>
    %79 = vector.shape_cast %78 : vector<1xf32> to vector<1x1x1xf32>
    %80 = vector.extract %79[0, 0, 0] : f32 from vector<1x1x1xf32>
    %81 = math.sqrt %80 : f32
    %c0_29 = arith.constant 0 : index
    %c0_30 = arith.constant 0 : index
    %c0_31 = arith.constant 0 : index
    %82 = vector.load %arg4[%c0_29, %c0_30, %c0_31] : memref<1x33x33xf32, #tpu.memory_space<vmem>>, vector<1x33x33xf32>
    %83 = vector.shape_cast %82 : vector<1x33x33xf32> to vector<33x33xf32>
    %84 = arith.subf %73, %83 : vector<33x33xf32>
    %85 = arith.mulf %84, %84 : vector<33x33xf32>
    %86 = vector.shape_cast %85 : vector<33x33xf32> to vector<1x33x33xf32>
    %cst_32 = arith.constant dense<0.000000e+00> : vector<1xf32>
    %87 = vector.multi_reduction <add>, %86, %cst_32 [1, 2] : vector<1x33x33xf32> to vector<1xf32>
    %88 = vector.shape_cast %87 : vector<1xf32> to vector<1x1x1xf32>
    %89 = vector.extract %88[0, 0, 0] : f32 from vector<1x1x1xf32>
    %90 = math.sqrt %89 : f32
    %c0_33 = arith.constant 0 : index
    %c0_34 = arith.constant 0 : index
    %91 = vector.load %arg5[%c0_33, %c0_34] : memref<8x32xf32, #tpu.memory_space<vmem>>, vector<8x32xf32>
    %c0_35 = arith.constant 0 : index
    %c0_36 = arith.constant 0 : index
    %92 = vector.load %arg6[%c0_35, %c0_36] : memref<8x32xf32, #tpu.memory_space<vmem>>, vector<8x32xf32>
    %93 = arith.subf %91, %92 : vector<8x32xf32>
    %94 = arith.mulf %93, %93 : vector<8x32xf32>
    %95 = vector.shape_cast %94 : vector<8x32xf32> to vector<1x8x32xf32>
    %cst_37 = arith.constant dense<0.000000e+00> : vector<1xf32>
    %96 = vector.multi_reduction <add>, %95, %cst_37 [1, 2] : vector<1x8x32xf32> to vector<1xf32>
    %97 = vector.shape_cast %96 : vector<1xf32> to vector<1x1x1xf32>
    %98 = vector.extract %97[0, 0, 0] : f32 from vector<1x1x1xf32>
    %cst_38 = arith.constant 2.560000e+02 : f32
    %99 = arith.divf %98, %cst_38 : f32
    %cst_39 = arith.constant 1.000000e+00 : f32
    %100 = arith.mulf %cst_39, %99 : f32
    %cst_40 = arith.constant 1.000000e+00 : f32
    %101 = arith.mulf %cst_40, %81 : f32
    %102 = arith.addf %100, %101 : f32
    %cst_41 = arith.constant 1.000000e+00 : f32
    %103 = arith.mulf %cst_41, %90 : f32
    %104 = arith.addf %102, %103 : f32
    %105 = vector.broadcast %104 : f32 to vector<1x1xf32>
    %c0_42 = arith.constant 0 : index
    %c0_43 = arith.constant 0 : index
    %106 = vector.load %arg8[%c0_42, %c0_43] : memref<1x1xf32, #tpu.memory_space<vmem>>, vector<1x1xf32>
    tpu.vector_store %arg8[%c0_42, %c0_43], %105 {strides = array<i32>} : memref<1x1xf32, #tpu.memory_space<vmem>>, vector<1x1xf32>,
    return
  }
  func.func @transform_0(%arg0: i32, %arg1: memref<1xi32, #tpu.memory_space<smem>>) -> (i32, i32, i32) {
    %c0_i32 = arith.constant 0 : i32
    %c0_i32_0 = arith.constant 0 : i32
    %c0_i32_1 = arith.constant 0 : i32
    %c0_i32_2 = arith.constant 0 : i32
    return %c0_i32, %c0_i32_0, %c0_i32_1 : i32, i32, i32
  }
  func.func @transform_1(%arg0: i32, %arg1: memref<1xi32, #tpu.memory_space<smem>>) -> (i32, i32) {
    %c0_i32 = arith.constant 0 : i32
    %c0_i32_0 = arith.constant 0 : i32
    %c0_i32_1 = arith.constant 0 : i32
    return %c0_i32, %c0_i32_0 : i32, i32
  }
  func.func @transform_2(%arg0: i32, %arg1: memref<1xi32, #tpu.memory_space<smem>>) -> (i32, i32, i32) {
    %c0 = arith.constant 0 : index
    %0 = memref.load %arg1[%c0] : memref<1xi32, #tpu.memory_space<smem>>
    %c0_i32 = arith.constant 0 : i32
    %c0_i32_0 = arith.constant 0 : i32
    %c0_i32_1 = arith.constant 0 : i32
    return %0, %c0_i32, %c0_i32_0 : i32, i32, i32
  }
  func.func @transform_3(%arg0: i32, %arg1: memref<1xi32, #tpu.memory_space<smem>>) -> (i32, i32) {
    %c0_i32 = arith.constant 0 : i32
    %c0_i32_0 = arith.constant 0 : i32
    %c0_i32_1 = arith.constant 0 : i32
    return %c0_i32, %c0_i32_0 : i32, i32
  }
  func.func @transform_4(%arg0: i32, %arg1: memref<1xi32, #tpu.memory_space<smem>>) -> (i32, i32) {
    %c0_i32 = arith.constant 0 : i32
    %c0_i32_0 = arith.constant 0 : i32
    %c0_i32_1 = arith.constant 0 : i32
    return %c0_i32, %c0_i32_0 : i32, i32
  }
  func.func @transform_5(%arg0: i32, %arg1: memref<1xi32, #tpu.memory_space<smem>>) -> (i32, i32) {
    %c0_i32 = arith.constant 0 : i32
    %c0_i32_0 = arith.constant 0 : i32
    %c0_i32_1 = arith.constant 0 : i32
    return %c0_i32, %c0_i32_0 : i32, i32
  }
  func.func @transform_6(%arg0: i32, %arg1: memref<1xi32, #tpu.memory_space<smem>>) -> (i32, i32) {
    %c0_i32 = arith.constant 0 : i32
    %c0_i32_0 = arith.constant 0 : i32
    %c0_i32_1 = arith.constant 0 : i32
    return %c0_i32, %c0_i32_0 : i32, i32
  }
}

</mosaic_0001>

<llo_original>
// kernel: _united_dmd_loss_jit.1
$region0: #{_united_dmd_loss_jit.1}
  #allocation0 [shape = 'u32[]', space=smem, size = 0x4, offset = 0x4, fixed_abs, tag = 'smem constant byte address 0x4 - core index']
  #allocation1 [shape = 'u32[144,128]{1,0:T(1,128)}', space=vmem, size = 0x12000, scoped, tag = 'internal scratch']
  #allocation2 [shape = 's32[1]{0}', space=sflag, size = 0x4, scoped, tag = 'scoped memory for _united_dmd_loss_jit.1']
  #allocation3 [shape = 's32[1]{0:T(128)S(6)}', space=smem, size = 0x200, scoped, tag = 'prefetched SMEM operand 0']
  %s0 = inlined_call_operand.<no memory space> [shape: s32[1], index: 0, kind: input, shape index: {}]
  %s1 = inlined_call_operand.vmem [shape: f32[3,33,33], index: 1, kind: input, shape index: {}]
  %s2 = inlined_call_operand.vmem [shape: f32[33,33], index: 2, kind: input, shape index: {}]
  %s3 = inlined_call_operand.vmem [shape: f32[4,33,33], index: 3, kind: input, shape index: {}]
  %s4 = inlined_call_operand.vmem [shape: f32[8,32], index: 4, kind: input, shape index: {}]
  %s5 = inlined_call_operand.vmem [shape: f32[8,32], index: 5, kind: input, shape index: {}]
  %s6 = inlined_call_operand.vmem [shape: f32[1,33], index: 6, kind: input, shape index: {}]
  %s7 = inlined_call_operand.hbm [shape: f32[1,1], index: 7, kind: output, shape index: {}]
  %s8 = sld [smem:[#allocation0]]
  $region34: #{_united_dmd_loss_jit.1} parent=0
    _
  %s10 = ssub.s32 1, %s8
  %s11 = scalar_select 0, %s10, %s8
  %12 = sst [smem:[#allocation3]] %s0
  $region1: #{_united_dmd_loss_jit.1} parent=0
    #allocation4 [shape = 'u8[512]{0}', space=vmem, size = 0x400, scoped, tag = 'output window, operand 0, single buffered']
    #allocation5 [shape = 's32[1]{0}', space=sflag, size = 0x4, scoped, tag = 'scoped memory for _united_dmd_loss_jit.1']
    %13 = vsyncpa [#allocation5], 0
    // Predicated region
    $region2: #{_united_dmd_loss_jit.1} parent=1 // pred_check
      _
    $region3: #{_united_dmd_loss_jit.1} parent=1 // pred_check_branch
      %15 = sbr.rel (0) target = $region5
    $region4: #{_united_dmd_loss_jit.1} parent=1 // pred_region
      _
    $region5: #{_united_dmd_loss_jit.1} parent=1 // pred_fallthru
      _
    // Predicated region
    $region6: #{_united_dmd_loss_jit.1} parent=1 // pred_check
      _
    $region7: #{_united_dmd_loss_jit.1} parent=1 // pred_check_branch
      %17 = sbr.rel (0) target = $region9
    $region8: #{_united_dmd_loss_jit.1} parent=1 // pred_region
      _
    $region9: #{_united_dmd_loss_jit.1} parent=1 // pred_fallthru
      _
    // Predicated region
    $region10: #{_united_dmd_loss_jit.1} parent=1 // pred_check
      _
    $region11: #{_united_dmd_loss_jit.1} parent=1 // pred_check_branch
      %19 = sbr.rel (0) target = $region13
    $region12: #{_united_dmd_loss_jit.1} parent=1 // pred_region
      %s20 = sld [smem:[#allocation3]]
      %p21 = scmp.lt.s32.totalorder %s20, 3
      %s22 = scalar_select %p21, %s20, 3
      %s23 = smul.addr %s22, 5
      %s24 = smul.addr %s23, 8
      %s25 = scalar_lea.vmem %s3, %s24
      %s26 = sld [smem:[#allocation3]]
    $region13: #{_united_dmd_loss_jit.1} parent=1 // pred_fallthru
      _
    // Predicated region
    $region14: #{_united_dmd_loss_jit.1} parent=1 // pred_check
      _
    $region15: #{_united_dmd_loss_jit.1} parent=1 // pred_check_branch
      %28 = sbr.rel (0) target = $region17
    $region16: #{_united_dmd_loss_jit.1} parent=1 // pred_region
      _
    $region17: #{_united_dmd_loss_jit.1} parent=1 // pred_fallthru
      _
    // Predicated region
    $region18: #{_united_dmd_loss_jit.1} parent=1 // pred_check
      _
    $region19: #{_united_dmd_loss_jit.1} parent=1 // pred_check_branch
      %30 = sbr.rel (0) target = $region21
    $region20: #{_united_dmd_loss_jit.1} parent=1 // pred_region
      _
    $region21: #{_united_dmd_loss_jit.1} parent=1 // pred_fallthru
      _
    // Predicated region
    $region22: #{_united_dmd_loss_jit.1} parent=1 // pred_check
      _
    $region23: #{_united_dmd_loss_jit.1} parent=1 // pred_check_branch
      %32 = sbr.rel (0) target = $region25
    $region24: #{_united_dmd_loss_jit.1} parent=1 // pred_region
      _
    $region25: #{_united_dmd_loss_jit.1} parent=1 // pred_fallthru
      _
    %s33 = sld [smem:[#allocation3]]
    %p34 = scmp.lt.s32.totalorder %s33, 3
    %s35 = scalar_select %p34, %s33, 3
    %s36 = smul.addr %s35, 5
    %s37 = smul.addr %s36, 8
    %s38 = scalar_lea.vmem %s3, %s37
    %s39 = sld [smem:[#allocation3]]
    %p40 = scmp.lt.s32.totalorder %s39, 3
    %s41 = scalar_select %p40, %s39, 3
    %s42 = smul.addr %s41, 5
    %s43 = smul.addr %s42, 8
    %s44 = scalar_lea.vmem %s3, %s43
    %s45 = sld [smem:[#allocation3]]
    %v47 = vld [vmem:[%s1] sm:$0xff]
    %v48 = vld [vmem:[%s1 + $0x8] sm:$0xff]
    %v49 = vld [vmem:[%s1 + $0x10] sm:$0xff]
    %v50 = vld [vmem:[%s1 + $0x18] sm:$0xff]
    %v51 = vld [vmem:[%s1 + $0x20] sm:$0x1]
    %v52 = vld [vmem:[%s6] sm:$0x1]
    %v54 = vlaneseq
    %v55 = vshrl.u32 %v54, 7
    %v56 = vsub.s32 0, %v55
    %v57 = vrot.slane %v52, %v56
    %v59 = vmul.f32 %v47, %v57
    %v60 = vmul.f32 %v48, %v57
    %v61 = vmul.f32 %v49, %v57
    %v62 = vmul.f32 %v50, %v57
    %v63 = vmul.f32 %v51, %v57
    %vm64 = vcmask 269312
    %v65 = vsel %vm64, %v59, 0.0
    %66 = vadd.xlane.f32.xlu0 %v65
    %v67 = vpop.xlane.xlu0 %66
    %v68 = vsel %vm64, %v60, 0.0
    %69 = vadd.xlane.f32.xlu0 %v68
    %v70 = vpop.xlane.xlu0 %69
    %v71 = vsel %vm64, %v61, 0.0
    %72 = vadd.xlane.f32.xlu0 %v71
    %v73 = vpop.xlane.xlu0 %72
    %v74 = vsel %vm64, %v62, 0.0
    %75 = vadd.xlane.f32.xlu0 %v74
    %v76 = vpop.xlane.xlu0 %75
    %vm77 = vcmask 262144
    %v78 = vsel %vm77, %v63, 0.0
    %79 = vadd.xlane.f32.xlu0 %v78
    %v80 = vpop.xlane.xlu0 %79
    %v81 = vand.u32 2147483647, %v67
    %v82 = vand.u32 2147483647, %v70
    %v83 = vand.u32 2147483647, %v73
    %v84 = vand.u32 2147483647, %v76
    %v85 = vand.u32 2147483647, %v80
    %v86 = vsub.f32 %v81, %v67
    %v87 = vsub.f32 %v82, %v70
    %v88 = vsub.f32 %v83, %v73
    %v89 = vsub.f32 %v84, %v76
    %v90 = vsub.f32 %v85, %v80
    %v91 = vmul.f32 %v67, %v86
    %v92 = vmul.f32 %v70, %v87
    %v93 = vmul.f32 %v73, %v88
    %v94 = vmul.f32 %v76, %v89
    %v95 = vmul.f32 %v80, %v90
    %vm96 = vcmask 7168
    %v97 = vsel %vm96, %v91, 0.0
    %v98 = vsel %vm96, %v92, 0.0
    %v99 = vadd.f32 %v97, %v98
    %v100 = vsel %vm96, %v93, 0.0
    %v101 = vadd.f32 %v99, %v100
    %v102 = vsel %vm96, %v94, 0.0
    %v103 = vadd.f32 %v101, %v102
    %vm104 = vcmask 0
    %v105 = vsel %vm104, %v95, 0.0
    %v106 = vadd.f32 %v103, %v105
    %107 = vadd.xlane.f32.xlu0 %v106
    %v108 = vpop.xlane.xlu0 %107
    %v109 = vrot.slane %v108, 4
    %v110 = vadd.f32 %v108, %v109
    %v111 = vrot.slane %v110, 2
    %v112 = vadd.f32 %v110, %v111
    %v113 = vrot.slane %v112, 1
    %v114 = vadd.f32 %v112, %v113
    %s115 = vtos %v114
    %s116 = smul.f32 %s115, 2.0
    %s117 = sand.u32 2147483647, %s116
    %s118 = smax.f32 %s117, 1e-30
    %p119 = scmp.gt.f32.partialorder %s117, 0.0
    %v120 = vstv %s118
    %v121 = vrsqrt.pop %v120
    %s122 = vtos %v121
    %v123 = vstv %s122
    %v124 = vmul.f32 %v86, %v123
    %v125 = vmul.f32 %v87, %v123
    %v126 = vmul.f32 %v88, %v123
    %v127 = vmul.f32 %v89, %v123
    %v128 = vmul.f32 %v90, %v123
    %s129 = scalar_select %p119, 1, 0
    %v130 = vstv %s129
    %vm131 = vcmp.eq.s32.totalorder %v130, 1
    %v132 = vsel %vm131, %v124, 0.0
    %v133 = vsel %vm131, %v125, 0.0
    %v134 = vsel %vm131, %v126, 0.0
    %v135 = vsel %vm131, %v127, 0.0
    %v136 = vsel %vm131, %v128, 0.0
    %v137 = vmul.f32 %v132, %v47
    %v138 = vmul.f32 %v133, %v48
    %v139 = vmul.f32 %v134, %v49
    %v140 = vmul.f32 %v135, %v50
    %v141 = vmul.f32 %v136, %v51
    %v142 = vsel %vm64, %v137, 0.0
    %v143 = vsel %vm64, %v138, 0.0
    %v144 = vadd.f32 %v142, %v143
    %v145 = vsel %vm64, %v139, 0.0
    %v146 = vadd.f32 %v144, %v145
    %v147 = vsel %vm64, %v140, 0.0
    %v148 = vadd.f32 %v146, %v147
    %v149 = vsel %vm77, %v141, 0.0
    %v150 = vadd.f32 %v148, %v149
    %v151 = vrot.slane %v150, 4
    %v152 = vadd.f32 %v150, %v151
    %v153 = vrot.slane %v152, 2
    %v154 = vadd.f32 %v152, %v153
    %v155 = vrot.slane %v154, 1
    %v156 = vadd.f32 %v154, %v155
    %v157 = vmul.f32 %v132, %v156
    %v158 = vmul.f32 %v133, %v156
    %v159 = vmul.f32 %v134, %v156
    %v160 = vmul.f32 %v135, %v156
    %v161 = vmul.f32 %v136, %v156
    %v162 = vsub.f32 %v47, %v157
    %v163 = vsub.f32 %v48, %v158
    %v164 = vsub.f32 %v49, %v159
    %v165 = vsub.f32 %v50, %v160
    %v166 = vsub.f32 %v51, %v161
    %v167 = vpack.c.bf16 %v48, %v47
    %v168 = vpack.c.bf16 %v50, %v49
    %v169 = vpack.c.bf16 %v51, %v51
    %v170 = vpack.c.bf16 %v163, %v162
    %v171 = vpack.c.bf16 %v165, %v164
    %v172 = vpack.c.bf16 %v166, %v166
    %s173 = scalar_lea.vmem %s1, 40
    %v174 = vld [vmem:[%s173] sm:$0xff]
    %v175 = vld [vmem:[%s173 + $0x8] sm:$0xff]
    %v176 = vld [vmem:[%s173 + $0x10] sm:$0xff]
    %v177 = vld [vmem:[%s173 + $0x18] sm:$0xff]
    %v178 = vld [vmem:[%s173 + $0x20] sm:$0x1]
    %v179 = vpack.c.bf16 %v175, %v174
    %v180 = vpack.c.bf16 %v177, %v176
    %v181 = vpack.c.bf16 %v178, %v178
    %v182 = vmax.f32 %v67, 0.0
    %v183 = vmax.f32 %v70, 0.0
    %v184 = vmax.f32 %v73, 0.0
    %v185 = vmax.f32 %v76, 0.0
    %v186 = vmax.f32 %v80, 0.0
    %v187 = vpack.c.bf16 %v183, %v182
    %v188 = vpack.c.bf16 %v185, %v184
    %v189 = vpack.c.bf16 %v186, %v186
    %v191 = vsel %vm64, %v179, 0
    %v194 = vsel %vm64, %v180, 0
    %v197 = vsel %vm64, %v181, 0
    %vm199 = vcmask 1040384
    %v200 = vsel 0, 4294967295, 65535
    %v201 = vsel %vm199, %v200, 0
    %v203 = vand.u32 %v189, %v201
    %205 = vmatprep.subr.bf16.mxu0 0
    %206 = vmatpush1.bf16.msra.mxu0 %v187
    %207 = vmatprep.subr.bf16.mxu0 0
    %208 = vmatpush1.bf16.msra.mxu0 %v188
    %209 = vmatprep.subr.bf16.mxu0 0
    %210 = vmatpush1.bf16.msra.mxu0 %v203
    %211 = vmatprep.subr.bf16.mxu0 0
    %212 = vmatpush1.bf16.msra.mxu0 0
    %213 = vmatprep.subr.bf16.mxu0 0
    %214 = vmatpush1.bf16.msra.mxu0 0
    %215 = vmatprep.subr.bf16.mxu0 0
    %216 = vmatpush1.bf16.msra.mxu0 0
    %217 = vmatprep.subr.bf16.mxu0 0
    %218 = vmatpush1.bf16.msra.mxu0 0
    %219 = vmatprep.subr.bf16.mxu0 0
    %220 = vmatpush1.bf16.msra.mxu0 0
    %221 = vmatprep.subr.bf16.mxu0 0
    %222 = vmatpush1.bf16.msra.mxu0 0
    %223 = vmatprep.subr.bf16.mxu0 0
    %224 = vmatpush1.bf16.msra.mxu0 0
    %225 = vmatprep.subr.bf16.mxu0 0
    %226 = vmatpush1.bf16.msra.mxu0 0
    %227 = vmatprep.subr.bf16.mxu0 0
    %228 = vmatpush1.bf16.msra.mxu0 0
    %229 = vmatprep.subr.bf16.mxu0 0
    %230 = vmatpush1.bf16.msra.mxu0 0
    %231 = vmatprep.subr.bf16.mxu0 0
    %232 = vmatpush1.bf16.msra.mxu0 0
    %233 = vmatprep.subr.bf16.mxu0 0
    %234 = vmatpush1.bf16.msra.mxu0 0
    %235 = vmatprep.subr.bf16.mxu0 0
    %236 = vmatpush1.bf16.msra.mxu0 0
    %237 = vmatprep.mubr.bf16.mxu0 0
    %238 = vmatmul.mubr.bf16.gmra.mrb[0].mxu0 %v191
    %v239 = vpop.f32.mrb[0].mxu0
    %v240 = vadd.f32 0.0, %v239
    %v241 = vpop.f32.mrb[0].mxu0
    %v242 = vpop.f32.mrb[0].mxu0
    %v243 = vadd.f32 0.0, %v242
    %v244 = vpop.f32.mrb[0].mxu0
    %245 = vmatprep.mubr.bf16.mxu0 0
    %246 = vmatmul.mubr.bf16.gmra.mrb[0].mxu0 %v194
    %v247 = vpop.f32.mrb[0].mxu0
    %v248 = vadd.f32 0.0, %v247
    %v249 = vpop.f32.mrb[0].mxu0
    %v250 = vpop.f32.mrb[0].mxu0
    %v251 = vadd.f32 0.0, %v250
    %v252 = vpop.f32.mrb[0].mxu0
    %253 = vmatprep.mubr.bf16.mxu0 0
    %254 = vmatmul.mubr.bf16.gmra.mrb[0].mxu0 %v197
    %v255 = vpop.f32.mrb[0].mxu0
    %v256 = vadd.f32 0.0, %v255
    %v257 = vpop.f32.mrb[0].mxu0
    %v258 = vpop.f32.mrb[0].mxu0
    %v259 = vpop.f32.mrb[0].mxu0
    %260 = vdwg.mxu0
    %v262 = vand.u32 %v169, %v201
    %264 = vmatprep.subr.bf16.mxu0 0
    %265 = vmatpush1.bf16.msra.mxu0 %v167
    %266 = vmatprep.subr.bf16.mxu0 0
    %267 = vmatpush1.bf16.msra.mxu0 %v168
    %268 = vmatprep.subr.bf16.mxu0 0
    %269 = vmatpush1.bf16.msra.mxu0 %v262
    %270 = vmatprep.subr.bf16.mxu0 0
    %271 = vmatpush1.bf16.msra.mxu0 0
    %272 = vmatprep.subr.bf16.mxu0 0
    %273 = vmatpush1.bf16.msra.mxu0 0
    %274 = vmatprep.subr.bf16.mxu0 0
    %275 = vmatpush1.bf16.msra.mxu0 0
    %276 = vmatprep.subr.bf16.mxu0 0
    %277 = vmatpush1.bf16.msra.mxu0 0
    %278 = vmatprep.subr.bf16.mxu0 0
    %279 = vmatpush1.bf16.msra.mxu0 0
    %280 = vmatprep.subr.bf16.mxu0 0
    %281 = vmatpush1.bf16.msra.mxu0 0
    %282 = vmatprep.subr.bf16.mxu0 0
    %283 = vmatpush1.bf16.msra.mxu0 0
    %284 = vmatprep.subr.bf16.mxu0 0
    %285 = vmatpush1.bf16.msra.mxu0 0
    %286 = vmatprep.subr.bf16.mxu0 0
    %287 = vmatpush1.bf16.msra.mxu0 0
    %288 = vmatprep.subr.bf16.mxu0 0
    %289 = vmatpush1.bf16.msra.mxu0 0
    %290 = vmatprep.subr.bf16.mxu0 0
    %291 = vmatpush1.bf16.msra.mxu0 0
    %292 = vmatprep.subr.bf16.mxu0 0
    %293 = vmatpush1.bf16.msra.mxu0 0
    %294 = vmatprep.subr.bf16.mxu0 0
    %295 = vmatpush1.bf16.msra.mxu0 0
    %296 = vmatprep.mubr.bf16.mxu0 0
    %297 = vmatmul.mubr.bf16.gmra.mrb[0].mxu0 %v191
    %v298 = vpop.f32.mrb[0].mxu0
    %v299 = vadd.f32 0.0, %v298
    %v300 = vpop.f32.mrb[0].mxu0
    %v301 = vpop.f32.mrb[0].mxu0
    %v302 = vadd.f32 0.0, %v301
    %v303 = vpop.f32.mrb[0].mxu0
    %304 = vmatprep.mubr.bf16.mxu0 0
    %305 = vmatmul.mubr.bf16.gmra.mrb[0].mxu0 %v194
    %v306 = vpop.f32.mrb[0].mxu0
    %v307 = vadd.f32 0.0, %v306
    %v308 = vpop.f32.mrb[0].mxu0
    %v309 = vpop.f32.mrb[0].mxu0
    %v310 = vadd.f32 0.0, %v309
    %v311 = vpop.f32.mrb[0].mxu0
    %312 = vmatprep.mubr.bf16.mxu0 0
    %313 = vmatmul.mubr.bf16.gmra.mrb[0].mxu0 %v197
    %v314 = vpop.f32.mrb[0].mxu0
    %v315 = vadd.f32 0.0, %v314
    %v316 = vpop.f32.mrb[0].mxu0
    %v317 = vpop.f32.mrb[0].mxu0
    %v318 = vpop.f32.mrb[0].mxu0
    %319 = vdwg.mxu0
    %v320 = vand.u32 2147483647, %v240
    %v321 = vand.u32 2147483647, %v243
    %v322 = vand.u32 2147483647, %v248
    %v323 = vand.u32 2147483647, %v251
    %v324 = vand.u32 2147483647, %v256
    %v325 = vsub.f32 %v320, %v240
    %v326 = vsub.f32 %v321, %v243
    %v327 = vsub.f32 %v322, %v248
    %v328 = vsub.f32 %v323, %v251
    %v329 = vsub.f32 %v324, %v256
    %v330 = vmul.f32 %v240, %v325
    %v331 = vmul.f32 %v243, %v326
    %v332 = vmul.f32 %v248, %v327
    %v333 = vmul.f32 %v251, %v328
    %v334 = vmul.f32 %v256, %v329
    %v335 = vsel %vm96, %v330, 0.0
    %v336 = vsel %vm96, %v331, 0.0
    %v337 = vadd.f32 %v335, %v336
    %v338 = vsel %vm96, %v332, 0.0
    %v339 = vadd.f32 %v337, %v338
    %v340 = vsel %vm96, %v333, 0.0
    %v341 = vadd.f32 %v339, %v340
    %v342 = vsel %vm104, %v334, 0.0
    %v343 = vadd.f32 %v341, %v342
    %344 = vadd.xlane.f32.xlu0 %v343
    %v345 = vpop.xlane.xlu0 %344
    %v346 = vrot.slane %v345, 4
    %v347 = vadd.f32 %v345, %v346
    %v348 = vrot.slane %v347, 2
    %v349 = vadd.f32 %v347, %v348
    %v350 = vrot.slane %v349, 1
    %v351 = vadd.f32 %v349, %v350
    %s352 = vtos %v351
    %s353 = smul.f32 %s352, 2.0
    %s354 = sand.u32 2147483647, %s353
    %s355 = smax.f32 %s354, 1e-30
    %p356 = scmp.gt.f32.partialorder %s354, 0.0
    %v357 = vstv %s355
    %v358 = vrsqrt.pop %v357
    %s359 = vtos %v358
    %v360 = vstv %s359
    %v361 = vmul.f32 %v325, %v360
    %v362 = vmul.f32 %v326, %v360
    %v363 = vmul.f32 %v327, %v360
    %v364 = vmul.f32 %v328, %v360
    %v365 = vmul.f32 %v329, %v360
    %s366 = scalar_select %p356, 1, 0
    %v367 = vstv %s366
    %vm368 = vcmp.eq.s32.totalorder %v367, 1
    %v369 = vsel %vm368, %v361, 0.0
    %v370 = vsel %vm368, %v362, 0.0
    %v371 = vsel %vm368, %v363, 0.0
    %v372 = vsel %vm368, %v364, 0.0
    %v373 = vsel %vm368, %v365, 0.0
    %375 = vset.pattern.permute.xlu0 0
    %376 = vperm.xlu0 %375, %v369
    %v377 = vpop.permute.xlu0 %376
    %380 = vset.pattern.permute.xlu0 0
    %381 = vperm.xlu0 %380, %v370
    %v382 = vpop.permute.xlu0 %381
    %385 = vset.pattern.permute.xlu0 0
    %386 = vperm.xlu0 %385, %v371
    %v387 = vpop.permute.xlu0 %386
    %390 = vset.pattern.permute.xlu0 0
    %391 = vperm.xlu0 %390, %v372
    %v392 = vpop.permute.xlu0 %391
    %395 = vset.pattern.permute.xlu0 0
    %396 = vperm.xlu0 %395, %v373
    %v397 = vpop.permute.xlu0 %396
    %v399 = vmul.f32 %v377, %v174
    %v400 = vmul.f32 %v382, %v175
    %v401 = vmul.f32 %v387, %v176
    %v402 = vmul.f32 %v392, %v177
    %v403 = vmul.f32 %v397, %v178
    %v404 = vsel %vm64, %v399, 0.0
    %v405 = vsel %vm64, %v400, 0.0
    %v406 = vadd.f32 %v404, %v405
    %v407 = vsel %vm64, %v401, 0.0
    %v408 = vadd.f32 %v406, %v407
    %v409 = vsel %vm64, %v402, 0.0
    %v410 = vadd.f32 %v408, %v409
    %v411 = vsel %vm77, %v403, 0.0
    %v412 = vadd.f32 %v410, %v411
    %v413 = vrot.slane %v412, 4
    %v414 = vadd.f32 %v412, %v413
    %v415 = vrot.slane %v414, 2
    %v416 = vadd.f32 %v414, %v415
    %v417 = vrot.slane %v416, 1
    %v418 = vadd.f32 %v416, %v417
    %v419 = vmul.f32 %v377, %v418
    %v420 = vmul.f32 %v382, %v418
    %v421 = vmul.f32 %v387, %v418
    %v422 = vmul.f32 %v392, %v418
    %v423 = vmul.f32 %v397, %v418
    %v424 = vsub.f32 %v174, %v419
    %v425 = vsub.f32 %v175, %v420
    %v426 = vsub.f32 %v176, %v421
    %v427 = vsub.f32 %v177, %v422
    %v428 = vsub.f32 %v178, %v423
    %v429 = vpack.c.bf16 %v425, %v424
    %v430 = vpack.c.bf16 %v427, %v426
    %v431 = vpack.c.bf16 %v428, %v428
    %v433 = vsel %vm64, %v429, 0
    %v436 = vsel %vm64, %v430, 0
    %v439 = vsel %vm64, %v431, 0
    %v442 = vand.u32 %v172, %v201
    %444 = vmatprep.subr.bf16.mxu0 0
    %445 = vmatpush1.bf16.msra.mxu0 %v170
    %446 = vmatprep.subr.bf16.mxu0 0
    %447 = vmatpush1.bf16.msra.mxu0 %v171
    %448 = vmatprep.subr.bf16.mxu0 0
    %449 = vmatpush1.bf16.msra.mxu0 %v442
    %450 = vmatprep.subr.bf16.mxu0 0
    %451 = vmatpush1.bf16.msra.mxu0 0
    %452 = vmatprep.subr.bf16.mxu0 0
    %453 = vmatpush1.bf16.msra.mxu0 0
    %454 = vmatprep.subr.bf16.mxu0 0
    %455 = vmatpush1.bf16.msra.mxu0 0
    %456 = vmatprep.subr.bf16.mxu0 0
    %457 = vmatpush1.bf16.msra.mxu0 0
    %458 = vmatprep.subr.bf16.mxu0 0
    %459 = vmatpush1.bf16.msra.mxu0 0
    %460 = vmatprep.subr.bf16.mxu0 0
    %461 = vmatpush1.bf16.msra.mxu0 0
    %462 = vmatprep.subr.bf16.mxu0 0
    %463 = vmatpush1.bf16.msra.mxu0 0
    %464 = vmatprep.subr.bf16.mxu0 0
    %465 = vmatpush1.bf16.msra.mxu0 0
    %466 = vmatprep.subr.bf16.mxu0 0
    %467 = vmatpush1.bf16.msra.mxu0 0
    %468 = vmatprep.subr.bf16.mxu0 0
    %469 = vmatpush1.bf16.msra.mxu0 0
    %470 = vmatprep.subr.bf16.mxu0 0
    %471 = vmatpush1.bf16.msra.mxu0 0
    %472 = vmatprep.subr.bf16.mxu0 0
    %473 = vmatpush1.bf16.msra.mxu0 0
    %474 = vmatprep.subr.bf16.mxu0 0
    %475 = vmatpush1.bf16.msra.mxu0 0
    %476 = vmatprep.mubr.bf16.mxu0 0
    %477 = vmatmul.mubr.bf16.gmra.mrb[0].mxu0 %v433
    %v478 = vpop.f32.mrb[0].mxu0
    %v479 = vadd.f32 0.0, %v478
    %v480 = vpop.f32.mrb[0].mxu0
    %v481 = vpop.f32.mrb[0].mxu0
    %v482 = vadd.f32 0.0, %v481
    %v483 = vpop.f32.mrb[0].mxu0
    %484 = vmatprep.mubr.bf16.mxu0 0
    %485 = vmatmul.mubr.bf16.gmra.mrb[0].mxu0 %v436
    %v486 = vpop.f32.mrb[0].mxu0
    %v487 = vadd.f32 0.0, %v486
    %v488 = vpop.f32.mrb[0].mxu0
    %v489 = vpop.f32.mrb[0].mxu0
    %v490 = vadd.f32 0.0, %v489
    %v491 = vpop.f32.mrb[0].mxu0
    %492 = vmatprep.mubr.bf16.mxu0 0
    %493 = vmatmul.mubr.bf16.gmra.mrb[0].mxu0 %v439
    %v494 = vpop.f32.mrb[0].mxu0
    %v495 = vadd.f32 0.0, %v494
    %v496 = vpop.f32.mrb[0].mxu0
    %v497 = vpop.f32.mrb[0].mxu0
    %v498 = vpop.f32.mrb[0].mxu0
    %499 = vdwg.mxu0
    %v500 = vpack.c.bf16 %v302, %v299
    %v501 = vpack.c.bf16 %v310, %v307
    %v502 = vpack.c.bf16 %v315, %v315
    %v503 = vpack.c.bf16 %v482, %v479
    %v504 = vpack.c.bf16 %v490, %v487
    %v505 = vpack.c.bf16 %v495, %v495
    %s506 = scalar_lea.vmem %s1, 80
    %v507 = vld [vmem:[%s506] sm:$0xff]
    %v508 = vld [vmem:[%s506 + $0x8] sm:$0xff]
    %v509 = vld [vmem:[%s506 + $0x10] sm:$0xff]
    %v510 = vld [vmem:[%s506 + $0x18] sm:$0xff]
    %v511 = vld [vmem:[%s506 + $0x20] sm:$0x1]
    %v512 = vpack.c.bf16 %v508, %v507
    %v513 = vpack.c.bf16 %v510, %v509
    %v514 = vpack.c.bf16 %v511, %v511
    %v516 = vsel %vm64, %v512, 0
    %v519 = vsel %vm64, %v513, 0
    %v522 = vsel %vm64, %v514, 0
    %v525 = vand.u32 %v502, %v201
    %527 = vmatprep.subr.bf16.mxu0 0
    %528 = vmatpush1.bf16.msra.mxu0 %v500
    %529 = vmatprep.subr.bf16.mxu0 0
    %530 = vmatpush1.bf16.msra.mxu0 %v501
    %531 = vmatprep.subr.bf16.mxu0 0
    %532 = vmatpush1.bf16.msra.mxu0 %v525
    %533 = vmatprep.subr.bf16.mxu0 0
    %534 = vmatpush1.bf16.msra.mxu0 0
    %535 = vmatprep.subr.bf16.mxu0 0
    %536 = vmatpush1.bf16.msra.mxu0 0
    %537 = vmatprep.subr.bf16.mxu0 0
    %538 = vmatpush1.bf16.msra.mxu0 0
    %539 = vmatprep.subr.bf16.mxu0 0
    %540 = vmatpush1.bf16.msra.mxu0 0
    %541 = vmatprep.subr.bf16.mxu0 0
    %542 = vmatpush1.bf16.msra.mxu0 0
    %543 = vmatprep.subr.bf16.mxu0 0
    %544 = vmatpush1.bf16.msra.mxu0 0
    %545 = vmatprep.subr.bf16.mxu0 0
    %546 = vmatpush1.bf16.msra.mxu0 0
    %547 = vmatprep.subr.bf16.mxu0 0
    %548 = vmatpush1.bf16.msra.mxu0 0
    %549 = vmatprep.subr.bf16.mxu0 0
    %550 = vmatpush1.bf16.msra.mxu0 0
    %551 = vmatprep.subr.bf16.mxu0 0
    %552 = vmatpush1.bf16.msra.mxu0 0
    %553 = vmatprep.subr.bf16.mxu0 0
    %554 = vmatpush1.bf16.msra.mxu0 0
    %555 = vmatprep.subr.bf16.mxu0 0
    %556 = vmatpush1.bf16.msra.mxu0 0
    %557 = vmatprep.subr.bf16.mxu0 0
    %558 = vmatpush1.bf16.msra.mxu0 0
    %559 = vmatprep.mubr.bf16.mxu0 0
    %560 = vmatmul.mubr.bf16.gmra.mrb[0].mxu0 %v516
    %v561 = vpop.f32.mrb[0].mxu0
    %v562 = vadd.f32 0.0, %v561
    %v563 = vpop.f32.mrb[0].mxu0
    %v564 = vpop.f32.mrb[0].mxu0
    %v565 = vadd.f32 0.0, %v564
    %v566 = vpop.f32.mrb[0].mxu0
    %567 = vmatprep.mubr.bf16.mxu0 0
    %568 = vmatmul.mubr.bf16.gmra.mrb[0].mxu0 %v519
    %v569 = vpop.f32.mrb[0].mxu0
    %v570 = vadd.f32 0.0, %v569
    %v571 = vpop.f32.mrb[0].mxu0
    %v572 = vpop.f32.mrb[0].mxu0
    %v573 = vadd.f32 0.0, %v572
    %v574 = vpop.f32.mrb[0].mxu0
    %575 = vmatprep.mubr.bf16.mxu0 0
    %576 = vmatmul.mubr.bf16.gmra.mrb[0].mxu0 %v522
    %v577 = vpop.f32.mrb[0].mxu0
    %v578 = vadd.f32 0.0, %v577
    %v579 = vpop.f32.mrb[0].mxu0
    %v580 = vpop.f32.mrb[0].mxu0
    %v581 = vpop.f32.mrb[0].mxu0
    %582 = vdwg.mxu0
    %v584 = vand.u32 %v505, %v201
    %586 = vmatprep.subr.bf16.mxu0 0
    %587 = vmatpush1.bf16.msra.mxu0 %v503
    %588 = vmatprep.subr.bf16.mxu0 0
    %589 = vmatpush1.bf16.msra.mxu0 %v504
    %590 = vmatprep.subr.bf16.mxu0 0
    %591 = vmatpush1.bf16.msra.mxu0 %v584
    %592 = vmatprep.subr.bf16.mxu0 0
    %593 = vmatpush1.bf16.msra.mxu0 0
    %594 = vmatprep.subr.bf16.mxu0 0
    %595 = vmatpush1.bf16.msra.mxu0 0
    %596 = vmatprep.subr.bf16.mxu0 0
    %597 = vmatpush1.bf16.msra.mxu0 0
    %598 = vmatprep.subr.bf16.mxu0 0
    %599 = vmatpush1.bf16.msra.mxu0 0
    %600 = vmatprep.subr.bf16.mxu0 0
    %601 = vmatpush1.bf16.msra.mxu0 0
    %602 = vmatprep.subr.bf16.mxu0 0
    %603 = vmatpush1.bf16.msra.mxu0 0
    %604 = vmatprep.subr.bf16.mxu0 0
    %605 = vmatpush1.bf16.msra.mxu0 0
    %606 = vmatprep.subr.bf16.mxu0 0
    %607 = vmatpush1.bf16.msra.mxu0 0
    %608 = vmatprep.subr.bf16.mxu0 0
    %609 = vmatpush1.bf16.msra.mxu0 0
    %610 = vmatprep.subr.bf16.mxu0 0
    %611 = vmatpush1.bf16.msra.mxu0 0
    %612 = vmatprep.subr.bf16.mxu0 0
    %613 = vmatpush1.bf16.msra.mxu0 0
    %614 = vmatprep.subr.bf16.mxu0 0
    %615 = vmatpush1.bf16.msra.mxu0 0
    %616 = vmatprep.subr.bf16.mxu0 0
    %617 = vmatpush1.bf16.msra.mxu0 0
    %618 = vmatprep.mubr.bf16.mxu0 0
    %619 = vmatmul.mubr.bf16.gmra.mrb[0].mxu0 %v516
    %v620 = vpop.f32.mrb[0].mxu0
    %v621 = vadd.f32 0.0, %v620
    %v622 = vpop.f32.mrb[0].mxu0
    %v623 = vpop.f32.mrb[0].mxu0
    %v624 = vadd.f32 0.0, %v623
    %v625 = vpop.f32.mrb[0].mxu0
    %626 = vmatprep.mubr.bf16.mxu0 0
    %627 = vmatmul.mubr.bf16.gmra.mrb[0].mxu0 %v519
    %v628 = vpop.f32.mrb[0].mxu0
    %v629 = vadd.f32 0.0, %v628
    %v630 = vpop.f32.mrb[0].mxu0
    %v631 = vpop.f32.mrb[0].mxu0
    %v632 = vadd.f32 0.0, %v631
    %v633 = vpop.f32.mrb[0].mxu0
    %634 = vmatprep.mubr.bf16.mxu0 0
    %635 = vmatmul.mubr.bf16.gmra.mrb[0].mxu0 %v522
    %v636 = vpop.f32.mrb[0].mxu0
    %v637 = vadd.f32 0.0, %v636
    %v638 = vpop.f32.mrb[0].mxu0
    %v639 = vpop.f32.mrb[0].mxu0
    %v640 = vpop.f32.mrb[0].mxu0
    %641 = vdwg.mxu0
    %v642 = vld [vmem:[%s2] sm:$0xff]
    %v643 = vld [vmem:[%s2 + $0x8] sm:$0xff]
    %v644 = vld [vmem:[%s2 + $0x10] sm:$0xff]
    %v645 = vld [vmem:[%s2 + $0x18] sm:$0xff]
    %v646 = vld [vmem:[%s2 + $0x20] sm:$0x1]
    %v647 = vsub.f32 %v562, %v642
    %v648 = vsub.f32 %v565, %v643
    %v649 = vsub.f32 %v570, %v644
    %v650 = vsub.f32 %v573, %v645
    %v651 = vsub.f32 %v578, %v646
    %v652 = vmul.f32 %v647, %v647
    %v653 = vmul.f32 %v648, %v648
    %v654 = vmul.f32 %v649, %v649
    %v655 = vmul.f32 %v650, %v650
    %v656 = vmul.f32 %v651, %v651
    %v657 = vsel %vm64, %v652, 0.0
    %v658 = vsel %vm64, %v653, 0.0
    %v659 = vadd.f32 %v657, %v658
    %v660 = vsel %vm64, %v654, 0.0
    %v661 = vadd.f32 %v659, %v660
    %v662 = vsel %vm64, %v655, 0.0
    %v663 = vadd.f32 %v661, %v662
    %v664 = vsel %vm77, %v656, 0.0
    %v665 = vadd.f32 %v663, %v664
    %666 = vadd.xlane.f32.xlu0 %v665
    %v667 = vpop.xlane.xlu0 %666
    %v668 = vrot.slane %v667, 4
    %v669 = vadd.f32 %v667, %v668
    %v670 = vrot.slane %v669, 2
    %v671 = vadd.f32 %v669, %v670
    %v672 = vrot.slane %v671, 1
    %v673 = vadd.f32 %v671, %v672
    %s674 = vtos %v673
    %v675 = vstv %s674
    %v676 = vrsqrt.pop %v675
    %v677 = vmul.f32 %v675, %v676
    %vm678 = vcmp.eq.f32.partialorder %v675, inf
    %v679 = vsel %vm678, %v675, %v677
    %vm680 = vcmp.eq.f32.partialorder %v675, 0.0
    %v681 = vand.u32 %v675, 2147483648
    %v682 = vsel %vm680, %v681, %v679
    %s683 = vtos %v682
    %v684 = vld [vmem:[%s44] sm:$0xff]
    %v685 = vld [vmem:[%s44 + $0x8] sm:$0xff]
    %v686 = vld [vmem:[%s44 + $0x10] sm:$0xff]
    %v687 = vld [vmem:[%s44 + $0x18] sm:$0xff]
    %v688 = vld [vmem:[%s44 + $0x20] sm:$0x1]
    %v689 = vsub.f32 %v621, %v684
    %v690 = vsub.f32 %v624, %v685
    %v691 = vsub.f32 %v629, %v686
    %v692 = vsub.f32 %v632, %v687
    %v693 = vsub.f32 %v637, %v688
    %v694 = vmul.f32 %v689, %v689
    %v695 = vmul.f32 %v690, %v690
    %v696 = vmul.f32 %v691, %v691
    %v697 = vmul.f32 %v692, %v692
    %v698 = vmul.f32 %v693, %v693
    %v699 = vsel %vm64, %v694, 0.0
    %v700 = vsel %vm64, %v695, 0.0
    %v701 = vadd.f32 %v699, %v700
    %v702 = vsel %vm64, %v696, 0.0
    %v703 = vadd.f32 %v701, %v702
    %v704 = vsel %vm64, %v697, 0.0
    %v705 = vadd.f32 %v703, %v704
    %v706 = vsel %vm77, %v698, 0.0
    %v707 = vadd.f32 %v705, %v706
    %708 = vadd.xlane.f32.xlu0 %v707
    %v709 = vpop.xlane.xlu0 %708
    %v710 = vrot.slane %v709, 4
    %v711 = vadd.f32 %v709, %v710
    %v712 = vrot.slane %v711, 2
    %v713 = vadd.f32 %v711, %v712
    %v714 = vrot.slane %v713, 1
    %v715 = vadd.f32 %v713, %v714
    %s716 = vtos %v715
    %v717 = vstv %s716
    %v718 = vrsqrt.pop %v717
    %v719 = vmul.f32 %v717, %v718
    %vm720 = vcmp.eq.f32.partialorder %v717, inf
    %v721 = vsel %vm720, %v717, %v719
    %vm722 = vcmp.eq.f32.partialorder %v717, 0.0
    %v723 = vand.u32 %v717, 2147483648
    %v724 = vsel %vm722, %v723, %v721
    %s725 = vtos %v724
    %v726 = vld [vmem:[%s4] sm:$0xff]
    %v727 = vld [vmem:[%s5] sm:$0xff]
    %v728 = vsub.f32 %v726, %v727
    %v729 = vmul.f32 %v728, %v728
    %vm730 = vcmask 261120
    %v731 = vsel %vm730, %v729, 0.0
    %732 = vadd.xlane.f32.xlu0 %v731
    %v733 = vpop.xlane.xlu0 %732
    %v734 = vrot.slane %v733, 4
    %v735 = vadd.f32 %v733, %v734
    %v736 = vrot.slane %v735, 2
    %v737 = vadd.f32 %v735, %v736
    %v738 = vrot.slane %v737, 1
    %v739 = vadd.f32 %v737, %v738
    %s740 = vtos %v739
    %v741 = vrcp.pop 256.0
    %s742 = vtos %v741
    %s743 = smul.f32 %s740, %s742
    %s744 = sadd.f32 %s743, %s683
    %s745 = sadd.f32 %s744, %s725
    %v746 = vstv %s745
    %747 = vst.msk [vmem:[#allocation4] sm:$0x1] %vm104, %v746
    // Predicated region
    $region26: #{_united_dmd_loss_jit.1} parent=1 // pred_check
      _
    $region27: #{_united_dmd_loss_jit.1} parent=1 // pred_check_branch
      %749 = sbr.rel (0) target = $region29
    $region28: #{_united_dmd_loss_jit.1} parent=1 // pred_region
      %s751 = ssub.s32 16, 16
      %752 = vsyncadd [#allocation5], %s751
      %s754 = sshll.u32 [#allocation4], 4
      %s755 = int_to_ptr.vmem [resolvable:$true] %s754
      %757 = dma.vmem_to_hbm [thread:$0]  %s755, 16, %s7, [#allocation5]
    $region29: #{_united_dmd_loss_jit.1} parent=1 // pred_fallthru
      _
    // Predicated region
    $region30: #{_united_dmd_loss_jit.1} parent=1 // pred_check
      _
    $region31: #{_united_dmd_loss_jit.1} parent=1 // pred_check_branch
      %759 = sbr.rel (0) target = $region33
    $region32: #{_united_dmd_loss_jit.1} parent=1 // pred_region
      %760 = dma.done [#allocation5], 16
    $region33: #{_united_dmd_loss_jit.1} parent=1 // pred_fallthru
      _
    %761 = vsyncpa [#allocation5], 1

</llo_original>
